<compile_context>
chip_gen: v6e
topology: v6e:2x2x1
jax: 0.10.0
libtpu: 0.0.40
codegen_flags: <defaults>
</compile_context>

<pallas_src>
import functools

import jax
import jax.numpy as jnp
from jax.experimental import pallas as pl
from jax.experimental.pallas import tpu as pltpu

KERNEL_SIZE = 3      # must be odd so output seq_len == input seq_len (PyTorch K//2 pad)
SEQ_TILE = 256       # M tile for the matmul grid (multiple of 8; MXU-friendly)


def _round_up(x, m):
    return ((x + m - 1) // m) * m


# --------------------------------------------------------------------------- #
# Kernel: one fused matmul per seq tile: (tile, Kp) x (Kp, NFp) + bias
# --------------------------------------------------------------------------- #
def conv_kernel(x_ref, w_ref, b_ref, o_ref):
    # x_ref: (tile, Kp) f32   w_ref: (Kp, NFp) f32   b_ref: (1, NFp) f32
    # o_ref: (tile, NFp) f32
    acc = jnp.dot(
        x_ref[...].astype(jnp.bfloat16),
        w_ref[...].astype(jnp.bfloat16),
        preferred_element_type=jnp.float32,
    )
    o_ref[...] = (acc + b_ref[...]).astype(o_ref.dtype)


# --------------------------------------------------------------------------- #
# One-time parameter preparation (done at parameter-load time, not per call)
# --------------------------------------------------------------------------- #
def prepare_conv_params(weight, bias):
    """weight: (n_filter, 1, K, emb), bias: (n_filter,) ->
    w_col (K*emb padded to 128-mult, n_filter padded to 128), b_row (1, NFp)."""
    n_filter, _, K, emb = weight.shape
    k_dim = K * emb
    k_pad = _round_up(k_dim, 128)
    nf_pad = _round_up(max(n_filter, 128), 128)

    # w_col[dk*emb + e, f] = weight[f, 0, dk, e]   (cross-correlation, PyTorch)
    w_col = weight[:, 0, :, :].reshape(n_filter, k_dim).T
    w_col = jnp.pad(w_col, ((0, k_pad - k_dim), (0, nf_pad - n_filter)))
    b_row = jnp.pad(bias.reshape(1, n_filter), ((0, 0), (0, nf_pad - n_filter)))
    return w_col, b_row


# --------------------------------------------------------------------------- #
# Forward wrapper
# --------------------------------------------------------------------------- #
@functools.partial(jax.jit, static_argnames=("kernel_size", "n_filter"))
def conv_module_forward(sentence, w_col, b_row, *, kernel_size=KERNEL_SIZE,
                        n_filter=None):
    """sentence: (seq, 1, emb) f32; w_col/b_row from prepare_conv_params.
    Returns (seq, 1, n_filter), matching ConvModule.forward in eval mode."""
    # TODO(synk): in_dropout(p=0.5) / out_dropout(p=0.1) are identity in eval mode.
    seq, _, emb = sentence.shape
    K = kernel_size
    assert K % 2 == 1, "kernel_size must be odd for same-length output"
    pad = K // 2
    k_dim = K * emb
    k_pad, nf_pad = w_col.shape

    # im2col slab: x_col[s, dk*emb + e] = xpad[s + dk, e]
    x = sentence[:, 0, :]                                     # (seq, emb)
    xpad = jnp.pad(x, ((pad, pad), (0, 0)))                   # (seq+K-1, emb)
    x_col = jnp.concatenate([xpad[dk:dk + seq, :] for dk in range(K)], axis=-1)

    # Pad seq to a tile multiple and contraction dim to the padded width.
    tile = min(SEQ_TILE, _round_up(seq, 8))
    seq_p = _round_up(seq, tile)
    x_col = jnp.pad(x_col, ((0, seq_p - seq), (0, k_pad - k_dim)))

    grid = (seq_p // tile,)
    out = pl.pallas_call(
        conv_kernel,
        out_shape=jax.ShapeDtypeStruct((seq_p, nf_pad), sentence.dtype),
        grid_spec=pltpu.PrefetchScalarGridSpec(
            num_scalar_prefetch=0,
            grid=grid,
            in_specs=[
                pl.BlockSpec((tile, k_pad), lambda i: (i, 0)),    # activations
                pl.BlockSpec((k_pad, nf_pad), lambda i: (0, 0)),  # weights (resident)
                pl.BlockSpec((1, nf_pad), lambda i: (0, 0)),      # bias (resident)
            ],
            out_specs=pl.BlockSpec((tile, nf_pad), lambda i: (i, 0)),
        ),
        compiler_params=pltpu.CompilerParams(
            dimension_semantics=("parallel",),     # shards seq tiles across TCs (v7x)
            vmem_limit_bytes=32 << 20,             # safe on v5e/v6e/v7x scoped VMEM
        ),
    )(x_col, w_col, b_row)

    nf = n_filter if n_filter is not None else nf_pad
    return out[:seq, :nf].reshape(seq, 1, nf)


# --------------------------------------------------------------------------- #
# Pure-JAX f32 reference (PyTorch-style cross-correlation)
# --------------------------------------------------------------------------- #
def _reference(sentence, weight, bias):
    seq, _, emb = sentence.shape
    n_filter, _, K, _ = weight.shape
    pad = K // 2
    x = sentence[:, 0, :]
    xpad = jnp.pad(x, ((pad, pad), (0, 0)))
    out = jnp.zeros((seq, n_filter), jnp.float32)
    for dk in range(K):
        out = out + xpad[dk:dk + seq, :] @ weight[:, 0, dk, :].T
    return (out + bias[None, :]).reshape(seq, 1, n_filter)


if __name__ == "__main__":
    seq_len, emb_dim, n_filter = 8, 32, 16

    key = jax.random.PRNGKey(0)
    k_x, k_w, k_b = jax.random.split(key, 3)

    sentence = jax.random.normal(k_x, (seq_len, 1, emb_dim), dtype=jnp.float32)
    weight = jax.random.normal(
        k_w, (n_filter, 1, KERNEL_SIZE, emb_dim), dtype=jnp.float32) * 0.05
    bias = jax.random.normal(k_b, (n_filter,), dtype=jnp.float32) * 0.05

    # One-time parameter prep (would happen at load time in a real model).
    w_col, b_row = prepare_conv_params(weight, bias)

    out = jax.block_until_ready(
        conv_module_forward(sentence, w_col, b_row,
                            kernel_size=KERNEL_SIZE, n_filter=n_filter))
    ref = _reference(sentence, weight, bias)

    assert out.shape == (seq_len, 1, n_filter)
    # bf16 MXU inputs with f32 accumulation -> small quantization error vs f32 ref.
    assert jnp.allclose(out, ref, atol=2e-2, rtol=2e-2), (
        float(jnp.max(jnp.abs(out - ref))))
    print("KERNEL_OK")
</pallas_src>

<mosaic_0001>
module attributes {stable_mosaic.version = 11 : i64} {
  func.func @conv_kernel(%arg0: i32, %arg1: memref<8x128xf32, #tpu.memory_space<vmem>>, %arg2: memref<128x128xf32, #tpu.memory_space<vmem>>, %arg3: memref<1x128xf32, #tpu.memory_space<vmem>>, %arg4: memref<8x128xf32, #tpu.memory_space<vmem>>) attributes {dimension_semantics = [#tpu.dimension_semantics<parallel>], iteration_bounds = array<i64: 1>, scalar_prefetch = 0 : i64, scratch_operands = 0 : i64, tpu.core_type = #tpu.core_type<tc>, window_params = [{transform_indices = @transform_0, window_bounds = array<i64: 8, 128>}, {pipeline_mode = #tpu.pipeline_mode<synchronous>, transform_indices = @transform_1, window_bounds = array<i64: 128, 128>}, {pipeline_mode = #tpu.pipeline_mode<synchronous>, transform_indices = @transform_2, window_bounds = array<i64: 1, 128>}, {transform_indices = @transform_3, window_bounds = array<i64: 8, 128>}]} {
    %c0 = arith.constant 0 : index
    %c0_0 = arith.constant 0 : index
    %0 = vector.load %arg1[%c0, %c0_0] : memref<8x128xf32, #tpu.memory_space<vmem>>, vector<8x128xf32>
    %1 = arith.truncf %0 : vector<8x128xf32> to vector<8x128xbf16>
    %c0_1 = arith.constant 0 : index
    %c0_2 = arith.constant 0 : index
    %2 = vector.load %arg2[%c0_1, %c0_2] : memref<128x128xf32, #tpu.memory_space<vmem>>, vector<128x128xf32>
    %3 = arith.truncf %2 : vector<128x128xf32> to vector<128x128xbf16>
    %cst = arith.constant dense<0.000000e+00> : vector<8x128xf32>
    %4 = tpu.matmul %1, %3, %cst {dimension_numbers = #tpu.dot_dimension_numbers<[1], [0], [0], [1], [0, 0, 1, 1], [], []>} : vector<8x128xbf16>, vector<128x128xbf16>, vector<8x128xf32> -> vector<8x128xf32>
    %c0_3 = arith.constant 0 : index
    %c0_4 = arith.constant 0 : index
    %5 = vector.load %arg3[%c0_3, %c0_4] : memref<1x128xf32, #tpu.memory_space<vmem>>, vector<1x128xf32>
    %6 = vector.broadcast %5 : vector<1x128xf32> to vector<8x128xf32>
    %7 = arith.addf %4, %6 : vector<8x128xf32>
    %c0_5 = arith.constant 0 : index
    %c0_6 = arith.constant 0 : index
    %8 = vector.load %arg4[%c0_5, %c0_6] : memref<8x128xf32, #tpu.memory_space<vmem>>, vector<8x128xf32>
    tpu.vector_store %arg4[%c0_5, %c0_6], %7 {strides = array<i32>} : memref<8x128xf32, #tpu.memory_space<vmem>>, vector<8x128xf32>,
    return
  }
  func.func @transform_0(%arg0: i32) -> (i32, i32) {
    %c0_i32 = arith.constant 0 : i32
    %c0_i32_0 = arith.constant 0 : i32
    return %arg0, %c0_i32 : i32, i32
  }
  func.func @transform_1(%arg0: i32) -> (i32, i32) {
    %c0_i32 = arith.constant 0 : i32
    %c0_i32_0 = arith.constant 0 : i32
    %c0_i32_1 = arith.constant 0 : i32
    return %c0_i32, %c0_i32_0 : i32, i32
  }
  func.func @transform_2(%arg0: i32) -> (i32, i32) {
    %c0_i32 = arith.constant 0 : i32
    %c0_i32_0 = arith.constant 0 : i32
    %c0_i32_1 = arith.constant 0 : i32
    return %c0_i32, %c0_i32_0 : i32, i32
  }
  func.func @transform_3(%arg0: i32) -> (i32, i32) {
    %c0_i32 = arith.constant 0 : i32
    %c0_i32_0 = arith.constant 0 : i32
    return %arg0, %c0_i32 : i32, i32
  }
}

</mosaic_0001>

<llo_original>
// kernel: conv_module_forward.1
$region0: #{conv_module_forward.1}
  #allocation0 [shape = 'u32[]', space=smem, size = 0x4, offset = 0x4, fixed_abs, tag = 'smem constant byte address 0x4 - core index']
  #allocation1 [shape = 'u32[144,128]{1,0:T(1,128)}', space=vmem, size = 0x12000, scoped, tag = 'internal scratch']
  %s0 = inlined_call_operand.vmem [shape: f32[8,128], index: 0, kind: input, shape index: {}]
  %s1 = inlined_call_operand.hbm [shape: f32[128,128], index: 1, kind: input, shape index: {}]
  %s2 = inlined_call_operand.vmem [shape: f32[1,128], index: 2, kind: input, shape index: {}]
  %s3 = inlined_call_operand.hbm [shape: f32[8,128], index: 3, kind: output, shape index: {}]
  %s4 = sld [smem:[#allocation0]]
  $region26: #{conv_module_forward.1} parent=0
    _
  %s6 = ssub.s32 1, %s4
  %s7 = scalar_select 0, %s6, %s4
  $region1: #{conv_module_forward.1} parent=0
    #allocation2 [shape = 'u8[65536]{0}', space=vmem, size = 0x10000, scoped, tag = 'input window, operand 1, single buffered']
    #allocation3 [shape = 's32[1]{0}', space=sflag, size = 0x4, scoped, tag = 'scoped memory for conv_module_forward.1']
    #allocation4 [shape = 's32[1]{0}', space=sflag, size = 0x4, scoped, tag = 'scoped memory for conv_module_forward.1']
    #allocation5 [shape = 'u8[4096]{0}', space=vmem, size = 0x1000, scoped, tag = 'output window, operand 0, single buffered']
    %8 = vsyncpa [#allocation3], 0
    %9 = vsyncpa [#allocation4], 0
    // Predicated region
    $region2: #{conv_module_forward.1} parent=1 // pred_check
      _
    $region3: #{conv_module_forward.1} parent=1 // pred_check_branch
      %11 = sbr.rel (0) target = $region5
    $region4: #{conv_module_forward.1} parent=1 // pred_region
      _
    $region5: #{conv_module_forward.1} parent=1 // pred_fallthru
      _
    // Predicated region
    $region6: #{conv_module_forward.1} parent=1 // pred_check
      _
    $region7: #{conv_module_forward.1} parent=1 // pred_check_branch
      %13 = sbr.rel (0) target = $region9
    $region8: #{conv_module_forward.1} parent=1 // pred_region
      %s15 = ssub.s32 2048, 2048
      %16 = vsyncadd [#allocation3], %s15
      %s17 = sshll.u32 [#allocation2], 4
      %s18 = int_to_ptr.vmem [resolvable:$true] %s17
      %23 = dma.hbm_to_vmem [thread:$0]  %s1, 2048, %s18, [#allocation3], 128, 128, 8
    $region9: #{conv_module_forward.1} parent=1 // pred_fallthru
      _
    // Predicated region
    $region10: #{conv_module_forward.1} parent=1 // pred_check
      _
    $region11: #{conv_module_forward.1} parent=1 // pred_check_branch
      %25 = sbr.rel (0) target = $region13
    $region12: #{conv_module_forward.1} parent=1 // pred_region
      _
    $region13: #{conv_module_forward.1} parent=1 // pred_fallthru
      _
    // Predicated region
    $region14: #{conv_module_forward.1} parent=1 // pred_check
      _
    $region15: #{conv_module_forward.1} parent=1 // pred_check_branch
      %27 = sbr.rel (0) target = $region17
    $region16: #{conv_module_forward.1} parent=1 // pred_region
      %28 = dma.done [#allocation3], 2048
    $region17: #{conv_module_forward.1} parent=1 // pred_fallthru
      _
    %v30 = vld [vmem:[%s0] sm:$0xff]
    %v31 = vpack.c.bf16 %v30, %v30
    %v32 = vld [vmem:[#allocation2] sm:$0xff]
    %v33 = vld [vmem:[#allocation2 + $0x8] sm:$0xff]
    %v34 = vld [vmem:[#allocation2 + $0x10] sm:$0xff]
    %v35 = vld [vmem:[#allocation2 + $0x18] sm:$0xff]
    %v36 = vld [vmem:[#allocation2 + $0x20] sm:$0xff]
    %v37 = vld [vmem:[#allocation2 + $0x28] sm:$0xff]
    %v38 = vld [vmem:[#allocation2 + $0x30] sm:$0xff]
    %v39 = vld [vmem:[#allocation2 + $0x38] sm:$0xff]
    %v40 = vld [vmem:[#allocation2 + $0x40] sm:$0xff]
    %v41 = vld [vmem:[#allocation2 + $0x48] sm:$0xff]
    %v42 = vld [vmem:[#allocation2 + $0x50] sm:$0xff]
    %v43 = vld [vmem:[#allocation2 + $0x58] sm:$0xff]
    %v44 = vld [vmem:[#allocation2 + $0x60] sm:$0xff]
    %v45 = vld [vmem:[#allocation2 + $0x68] sm:$0xff]
    %v46 = vld [vmem:[#allocation2 + $0x70] sm:$0xff]
    %v47 = vld [vmem:[#allocation2 + $0x78] sm:$0xff]
    %v48 = vpack.c.bf16 %v33, %v32
    %v49 = vpack.c.bf16 %v35, %v34
    %v50 = vpack.c.bf16 %v37, %v36
    %v51 = vpack.c.bf16 %v39, %v38
    %v52 = vpack.c.bf16 %v41, %v40
    %v53 = vpack.c.bf16 %v43, %v42
    %v54 = vpack.c.bf16 %v45, %v44
    %v55 = vpack.c.bf16 %v47, %v46
    %v56 = vld [vmem:[%s2] sm:$0x1]
    %v58 = vlaneseq
    %v59 = vshrl.u32 %v58, 7
    %v60 = vsub.s32 0, %v59
    %v61 = vrot.slane %v56, %v60
    %63 = vmatprep.subr.bf16.mxu0 0
    %64 = vmatpush1.bf16.msra.mxu0 %v55
    %65 = vmatprep.subr.bf16.mxu0 0
    %66 = vmatpush1.bf16.msra.mxu0 %v54
    %67 = vmatprep.subr.bf16.mxu0 0
    %68 = vmatpush1.bf16.msra.mxu0 %v53
    %69 = vmatprep.subr.bf16.mxu0 0
    %70 = vmatpush1.bf16.msra.mxu0 %v52
    %71 = vmatprep.subr.bf16.mxu0 0
    %72 = vmatpush1.bf16.msra.mxu0 %v51
    %73 = vmatprep.subr.bf16.mxu0 0
    %74 = vmatpush1.bf16.msra.mxu0 %v50
    %75 = vmatprep.subr.bf16.mxu0 0
    %76 = vmatpush1.bf16.msra.mxu0 %v49
    %77 = vmatprep.subr.bf16.mxu0 0
    %78 = vmatpush1.bf16.msra.mxu0 %v48
    %79 = vmatprep.subr.bf16.mxu0 0
    %80 = vmatpush2.bf16.msra.mxu0 0
    %81 = vmatprep.subr.bf16.mxu0 0
    %82 = vmatpush2.bf16.msra.mxu0 0
    %83 = vmatprep.subr.bf16.mxu0 0
    %84 = vmatpush2.bf16.msra.mxu0 0
    %85 = vmatprep.subr.bf16.mxu0 0
    %86 = vmatpush2.bf16.msra.mxu0 0
    %87 = vmatprep.subr.bf16.mxu0 0
    %88 = vmatpush2.bf16.msra.mxu0 0
    %89 = vmatprep.subr.bf16.mxu0 0
    %90 = vmatpush2.bf16.msra.mxu0 0
    %91 = vmatprep.subr.bf16.mxu0 0
    %92 = vmatpush2.bf16.msra.mxu0 0
    %93 = vmatprep.subr.bf16.mxu0 0
    %94 = vmatpush2.bf16.msra.mxu0 0
    %95 = vmatprep.mubr.bf16.mxu0 0
    %96 = vmatmul.mubr.bf16.gmra.mxu0 %v31
    %v97 = vpop.f32.mrf.mxu0
    %v98 = vadd.f32 %v61, %v97
    %v99 = vpop.f32.mrf.mxu0
    %v100 = vpop.f32.mrf.mxu0
    %v101 = vpop.f32.mrf.mxu0
    %102 = vdwg.mxu0
    %103 = vst [vmem:[#allocation5] sm:$0xff] %v98
    // Predicated region
    $region18: #{conv_module_forward.1} parent=1 // pred_check
      _
    $region19: #{conv_module_forward.1} parent=1 // pred_check_branch
      %105 = sbr.rel (0) target = $region21
    $region20: #{conv_module_forward.1} parent=1 // pred_region
      %s107 = ssub.s32 128, 128
      %108 = vsyncadd [#allocation4], %s107
      %s110 = sshll.u32 [#allocation5], 4
      %s111 = int_to_ptr.vmem [resolvable:$true] %s110
      %113 = dma.vmem_to_hbm [thread:$0]  %s111, 128, %s3, [#allocation4]
    $region21: #{conv_module_forward.1} parent=1 // pred_fallthru
      _
    // Predicated region
    $region22: #{conv_module_forward.1} parent=1 // pred_check
      _
    $region23: #{conv_module_forward.1} parent=1 // pred_check_branch
      %115 = sbr.rel (0) target = $region25
    $region24: #{conv_module_forward.1} parent=1 // pred_region
      %116 = dma.done [#allocation4], 128
    $region25: #{conv_module_forward.1} parent=1 // pred_fallthru
      _
    %117 = vsyncpa [#allocation3], 1
    %118 = vsyncpa [#allocation4], 1

</llo_original>
